<compile_context>
chip_gen: v7x
topology: tpu7x:2x2x1
jax: 0.10.0
libtpu: 0.0.40
codegen_flags: <defaults>
</compile_context>

<pallas_src>
import functools

import jax
import jax.numpy as jnp
from jax.experimental import pallas as pl
from jax.experimental.pallas import tpu as pltpu

_CLAMP = 1e-30


# ---------------------------------------------------------------------------
# only_last=True: gather one basket per sequence via scalar-prefetched index.
# ---------------------------------------------------------------------------
def _last_basket_kernel(last_ref, pred_ref, target_ref, psum_ref):
    """Per-sequence partial: sum_d log(loss) of the gathered basket.

    pred_ref/target_ref: (1, 1, 1, D) block of the (B, T, 1, D) view, already
    gathered at t = last[b]-1 by the index_map.  psum_ref: (1, 1, 1).
    last_ref is the SMEM scalar-prefetch ref (consumed only by index_maps).
    """
    del last_ref
    p = pred_ref[...].astype(jnp.float32)
    purchased = target_ref[...] != 0
    loss = jnp.where(purchased, p, 1.0 - p)
    loss = jnp.maximum(loss, jnp.float32(_CLAMP))
    psum_ref[...] = jnp.sum(jnp.log(loss), axis=3)          # (1, 1, 1)


def _bce_only_last(pred, target, last_i32):
    B, T, D = pred.shape
    pred4 = pred.reshape(B, T, 1, D)        # free metadata reshape
    target4 = target.reshape(B, T, 1, D)

    def gather_map(i, last_ref):
        # 1-based index; floor-mod reproduces PyTorch's wrap for last == 0.
        return (i, jnp.mod(last_ref[i] - 1, T), 0, 0)

    bytes_accessed = (B * D * (pred.dtype.itemsize + target.dtype.itemsize)
                      + B * 4 + B * 4)
    partial = pl.pallas_call(
        _last_basket_kernel,
        out_shape=jax.ShapeDtypeStruct((B, 1, 1), jnp.float32),
        grid_spec=pltpu.PrefetchScalarGridSpec(
            num_scalar_prefetch=1,
            grid=(B,),
            in_specs=[
                pl.BlockSpec((1, 1, 1, D), gather_map),      # pred row
                pl.BlockSpec((1, 1, 1, D), gather_map),      # target row
            ],
            out_specs=pl.BlockSpec((1, 1, 1), lambda i, last_ref: (i, 0, 0)),
        ),
        compiler_params=pltpu.CompilerParams(
            dimension_semantics=("parallel",)),
        cost_estimate=pl.CostEstimate(
            flops=4 * B * D, transcendentals=B * D,
            bytes_accessed=bytes_accessed),
    )(last_i32, pred4, target4)
    # Exactly one basket per sequence -> denominator is B * D.
    return -jnp.sum(partial) / jnp.float32(B * D)


# ---------------------------------------------------------------------------
# only_last=False: stream all baskets, masked reduction, per-step partials.
# ---------------------------------------------------------------------------
def _make_stream_kernel(batch_total):
    def kernel(pred_ref, target_ref, psum_ref, pcnt_ref):
        i = pl.program_id(0)
        p = pred_ref[...].astype(jnp.float32)                # (bt, T, D)
        purchased = target_ref[...] != 0
        bt, t_len, _ = p.shape

        # Baskets with at least one purchased item.
        sel = jnp.sum(purchased.astype(jnp.float32), axis=2) > 0.0   # (bt, T)
        # Mask padded batch rows of a ragged final block.
        b_idx = jax.lax.broadcasted_iota(jnp.int32, (bt, t_len), 0) + i * bt
        sel = jnp.logical_and(sel, b_idx < batch_total)

        loss = jnp.where(purchased, p, 1.0 - p)
        loss = jnp.maximum(loss, jnp.float32(_CLAMP))
        logv = jnp.where(sel[:, :, None], jnp.log(loss), 0.0)

        s = jnp.sum(jnp.sum(logv, axis=2), axis=1, keepdims=True)    # (bt, 1)
        c = jnp.sum(sel.astype(jnp.float32), axis=1, keepdims=True)  # (bt, 1)
        psum_ref[...] = jnp.sum(s, axis=0, keepdims=True).reshape(1, 1, 1)
        pcnt_ref[...] = jnp.sum(c, axis=0, keepdims=True).reshape(1, 1, 1)

    return kernel


def _bce_all_baskets(pred, target):
    B, T, D = pred.shape
    # Biggest batch tile whose pred+target block (with sublane/lane padding,
    # x2 for double buffering) stays ~16 MiB per buffer pair.
    t_pad = -(-T // 8) * 8
    d_pad = -(-D // 128) * 128
    padded_row_bytes = t_pad * d_pad * (pred.dtype.itemsize
                                        + target.dtype.itemsize)
    bt = max(1, min(B, (16 * 1024 * 1024) // max(padded_row_bytes, 1)))
    grid = (pl.cdiv(B, bt),)

    psum, pcnt = pl.pallas_call(
        _make_stream_kernel(B),
        out_shape=(jax.ShapeDtypeStruct((grid[0], 1, 1), jnp.float32),
                   jax.ShapeDtypeStruct((grid[0], 1, 1), jnp.float32)),
        grid_spec=pltpu.PrefetchScalarGridSpec(
            num_scalar_prefetch=0,
            grid=grid,
            in_specs=[pl.BlockSpec((bt, T, D), lambda i: (i, 0, 0)),
                      pl.BlockSpec((bt, T, D), lambda i: (i, 0, 0))],
            out_specs=(pl.BlockSpec((1, 1, 1), lambda i: (i, 0, 0)),
                       pl.BlockSpec((1, 1, 1), lambda i: (i, 0, 0))),
        ),
        compiler_params=pltpu.CompilerParams(
            dimension_semantics=("parallel",),
            vmem_limit_bytes=48 * 1024 * 1024),
        cost_estimate=pl.CostEstimate(
            flops=6 * B * T * D, transcendentals=B * T * D,
            bytes_accessed=B * T * D * (pred.dtype.itemsize
                                        + target.dtype.itemsize)),
    )(pred, target)
    total_sum = jnp.sum(psum)
    total_cnt = jnp.sum(pcnt)          # NaN (like torch.mean of empty) if 0
    return -total_sum / (total_cnt * jnp.float32(D))


# ---------------------------------------------------------------------------
# Public entry point.
# ---------------------------------------------------------------------------
@functools.partial(jax.jit, static_argnames=("only_last",))
def custom_bce(pred, target, last, only_last=True):
    """Pallas implementation of custom_BCE.forward. Returns a scalar f32."""
    last_i32 = last.astype(jnp.int32)
    if only_last:
        return _bce_only_last(pred, target, last_i32)
    return _bce_all_baskets(pred, target)


def _reference_bce(pred, target, last, only_last=True):
    """Pure-JAX mirror of the PyTorch custom_BCE, for validation."""
    pred = pred.astype(jnp.float32)
    target = target.astype(jnp.float32)
    B, T, D = pred.shape
    if only_last:
        b_idx = jnp.arange(B)
        p = pred[b_idx, last - 1, :]
        t = target[b_idx, last - 1, :]
        loss = jnp.where(t != 0, p, 1.0 - p)
        loss = jnp.maximum(loss, 1e-30)
        return -jnp.mean(jnp.log(loss))
    mask = jnp.sum(target, axis=2) > 0                       # (B, T)
    loss = jnp.where(target != 0, pred, 1.0 - pred)
    loss = jnp.maximum(loss, 1e-30)
    logv = jnp.where(mask[:, :, None], jnp.log(loss), 0.0)
    cnt = jnp.sum(mask).astype(jnp.float32) * D
    return -jnp.sum(logv) / cnt


if __name__ == "__main__":
    batch, seq, input_dim = 2, 8, 4

    key = jax.random.PRNGKey(0)
    kp, kt, kl = jax.random.split(key, 3)
    pred = jax.random.uniform(kp, (batch, seq, input_dim), jnp.float32,
                              1e-4, 1.0 - 1e-4)
    target = (jax.random.uniform(kt, (batch, seq, input_dim)) > 0.5
              ).astype(jnp.float32)
    last = jax.random.randint(kl, (batch,), 1, seq + 1)      # 1-based in [1,T]

    for only_last in (True, False):
        got = jax.block_until_ready(
            custom_bce(pred, target, last, only_last=only_last))
        want = jax.block_until_ready(
            _reference_bce(pred, target, last, only_last=only_last))
        assert got.shape == ()
        assert jnp.allclose(got, want, atol=1e-5, rtol=1e-5), \
            (only_last, float(got), float(want))

    print("KERNEL_OK")
</pallas_src>

<mosaic_0001>
module attributes {stable_mosaic.version = 11 : i64} {
  func.func @_last_basket_kernel(%arg0: i32, %arg1: memref<2xi32, #tpu.memory_space<smem>>, %arg2: memref<1x1x1x4xf32, #tpu.memory_space<vmem>>, %arg3: memref<1x1x1x4xf32, #tpu.memory_space<vmem>>, %arg4: memref<1x1x1xf32, #tpu.memory_space<vmem>>) attributes {dimension_semantics = [#tpu.dimension_semantics<parallel>], iteration_bounds = array<i64: 2>, scalar_prefetch = 1 : i64, scratch_operands = 0 : i64, tpu.core_type = #tpu.core_type<tc>, window_params = [{transform_indices = @transform_0, window_bounds = array<i64: 1, 1, 1, 4>}, {transform_indices = @transform_1, window_bounds = array<i64: 1, 1, 1, 4>}, {transform_indices = @transform_2, window_bounds = array<i64: 1, 1, 1>}]} {
    %c0 = arith.constant 0 : index
    %c0_0 = arith.constant 0 : index
    %c0_1 = arith.constant 0 : index
    %c0_2 = arith.constant 0 : index
    %0 = vector.load %arg2[%c0, %c0_0, %c0_1, %c0_2] : memref<1x1x1x4xf32, #tpu.memory_space<vmem>>, vector<1x1x1x4xf32>
    %c0_3 = arith.constant 0 : index
    %c0_4 = arith.constant 0 : index
    %c0_5 = arith.constant 0 : index
    %c0_6 = arith.constant 0 : index
    %1 = vector.load %arg3[%c0_3, %c0_4, %c0_5, %c0_6] : memref<1x1x1x4xf32, #tpu.memory_space<vmem>>, vector<1x1x1x4xf32>
    %cst = arith.constant 0.000000e+00 : f32
    %2 = vector.broadcast %cst : f32 to vector<1x1x1x4xf32>
    %3 = arith.cmpf one, %1, %2 : vector<1x1x1x4xf32>
    %cst_7 = arith.constant 1.000000e+00 : f32
    %4 = vector.broadcast %cst_7 : f32 to vector<1x1x1x4xf32>
    %5 = arith.subf %4, %0 : vector<1x1x1x4xf32>
    %6 = arith.select %3, %0, %5 : vector<1x1x1x4xi1>, vector<1x1x1x4xf32>
    %cst_8 = arith.constant 1.000000e-30 : f32
    %7 = vector.broadcast %cst_8 : f32 to vector<1x1x1x4xf32>
    %8 = arith.maximumf %6, %7 : vector<1x1x1x4xf32>
    %9 = math.log %8 : vector<1x1x1x4xf32>
    %cst_9 = arith.constant dense<0.000000e+00> : vector<1x1x1xf32>
    %10 = vector.multi_reduction <add>, %9, %cst_9 [3] : vector<1x1x1x4xf32> to vector<1x1x1xf32>
    %c0_10 = arith.constant 0 : index
    %c0_11 = arith.constant 0 : index
    %c0_12 = arith.constant 0 : index
    %11 = vector.load %arg4[%c0_10, %c0_11, %c0_12] : memref<1x1x1xf32, #tpu.memory_space<vmem>>, vector<1x1x1xf32>
    tpu.vector_store %arg4[%c0_10, %c0_11, %c0_12], %10 {strides = array<i32>} : memref<1x1x1xf32, #tpu.memory_space<vmem>>, vector<1x1x1xf32>,
    return
  }
  func.func @transform_0(%arg0: i32, %arg1: memref<2xi32, #tpu.memory_space<smem>>) -> (i32, i32, i32, i32) {
    %0 = arith.index_cast %arg0 : i32 to index
    %1 = memref.load %arg1[%0] : memref<2xi32, #tpu.memory_space<smem>>
    %c1_i32 = arith.constant 1 : i32
    %2 = arith.subi %1, %c1_i32 : i32
    %c8_i32 = arith.constant 8 : i32
    %c0_i32 = arith.constant 0 : i32
    %3 = arith.cmpi eq, %c8_i32, %c0_i32 : i32
    %c1_i32_0 = arith.constant 1 : i32
    %4 = arith.select %3, %c1_i32_0, %c8_i32 : i32
    %5 = arith.remsi %2, %4 : i32
    %c0_i32_1 = arith.constant 0 : i32
    %6 = arith.cmpi ne, %5, %c0_i32_1 : i32
    %c0_i32_2 = arith.constant 0 : i32
    %7 = arith.cmpi slt, %5, %c0_i32_2 : i32
    %c0_i32_3 = arith.constant 0 : i32
    %8 = arith.cmpi slt, %4, %c0_i32_3 : i32
    %9 = arith.xori %7, %8 : i1
    %10 = arith.andi %9, %6 : i1
    %11 = arith.addi %5, %4 : i32
    %12 = arith.select %10, %11, %5 : i32
    %c0_i32_4 = arith.constant 0 : i32
    %c0_i32_5 = arith.constant 0 : i32
    %c0_i32_6 = arith.constant 0 : i32
    return %arg0, %12, %c0_i32_4, %c0_i32_5 : i32, i32, i32, i32
  }
  func.func @transform_1(%arg0: i32, %arg1: memref<2xi32, #tpu.memory_space<smem>>) -> (i32, i32, i32, i32) {
    %0 = arith.index_cast %arg0 : i32 to index
    %1 = memref.load %arg1[%0] : memref<2xi32, #tpu.memory_space<smem>>
    %c1_i32 = arith.constant 1 : i32
    %2 = arith.subi %1, %c1_i32 : i32
    %c8_i32 = arith.constant 8 : i32
    %c0_i32 = arith.constant 0 : i32
    %3 = arith.cmpi eq, %c8_i32, %c0_i32 : i32
    %c1_i32_0 = arith.constant 1 : i32
    %4 = arith.select %3, %c1_i32_0, %c8_i32 : i32
    %5 = arith.remsi %2, %4 : i32
    %c0_i32_1 = arith.constant 0 : i32
    %6 = arith.cmpi ne, %5, %c0_i32_1 : i32
    %c0_i32_2 = arith.constant 0 : i32
    %7 = arith.cmpi slt, %5, %c0_i32_2 : i32
    %c0_i32_3 = arith.constant 0 : i32
    %8 = arith.cmpi slt, %4, %c0_i32_3 : i32
    %9 = arith.xori %7, %8 : i1
    %10 = arith.andi %9, %6 : i1
    %11 = arith.addi %5, %4 : i32
    %12 = arith.select %10, %11, %5 : i32
    %c0_i32_4 = arith.constant 0 : i32
    %c0_i32_5 = arith.constant 0 : i32
    %c0_i32_6 = arith.constant 0 : i32
    return %arg0, %12, %c0_i32_4, %c0_i32_5 : i32, i32, i32, i32
  }
  func.func @transform_2(%arg0: i32, %arg1: memref<2xi32, #tpu.memory_space<smem>>) -> (i32, i32, i32) {
    %c0_i32 = arith.constant 0 : i32
    %c0_i32_0 = arith.constant 0 : i32
    %c0_i32_1 = arith.constant 0 : i32
    return %arg0, %c0_i32, %c0_i32_0 : i32, i32, i32
  }
}

</mosaic_0001>

<llo_original>
// kernel: custom_bce.1
$region0: #{custom_bce.1}
  #allocation0 [shape = 'u32[]', space=smem, size = 0x4, offset = 0x4, fixed_abs, tag = 'smem constant byte address 0x4 - core index']
  #allocation1 [shape = 'u32[144,128]{1,0:T(1,128)}', space=vmem, size = 0x12000, scoped, tag = 'internal scratch']
  #allocation2 [shape = 's32[1]{0}', space=sflag, size = 0x4, scoped, tag = 'scoped memory for custom_bce.1']
  #allocation3 [shape = 'u8[512]{0}', space=smem, size = 0x200, scoped, tag = 'prefetched SMEM operand 0']
  %s0 = inlined_call_operand.vmem [shape: s32[2], index: 0, kind: input, shape index: {}]
  %s1 = inlined_call_operand.vmem [shape: f32[2,8,1,4], index: 1, kind: input, shape index: {}]
  %s2 = inlined_call_operand.vmem [shape: f32[2,8,1,4], index: 2, kind: input, shape index: {}]
  %s3 = inlined_call_operand.vmem [shape: f32[2,1,1], index: 3, kind: output, shape index: {}]
  %s4 = sld [smem:[#allocation0]]
  $region41: #{custom_bce.1} parent=0
    _
  %s6 = ssub.s32 1, %s4
  %s7 = scalar_select 0, %s6, %s4
  %s8 = sshll.u32 %s0, 4
  %s9 = int_to_ptr.vmem [resolvable:$true] %s8
  %11 = dma.vmem_to_smem %s9, 16, [#allocation3], [#allocation2]
  %12 = dma.done [#allocation2], 16
  %13 = sfence
  loop: start=0, step=1, limit=4
  $region2: #{custom_bce.1} parent=0 // loop_pre_header
    _
  $region3: #{custom_bce.1} parent=0 // loop_header
    %s15 = sphi 0, %s19
    %p16 = scmp.ge.s32.totalorder %s15, 4
    %s55 = sphi 0, %s57
    %s58 = sphi 0, %s55
    %s59 = sphi 0, %s58
    %s75 = sphi 0, %s59
    %s111 = sphi 0, %s113
    %s114 = sphi 0, %s111
    %s115 = sphi 0, %s114
    %s131 = sphi 0, %s115
    %s137 = sphi 0, %s139
    %s140 = sphi 0, %s137
    %s141 = sphi 0, %s140
    %s157 = sphi 0, %s141
  $region4: #{custom_bce.1} parent=0 // loop_header_branch
    %18 = sbr.rel (%p16) target = $region8
  $region5: #{custom_bce.1} parent=0 // loop_body
    %s20 = ssub.s32 %s15, 1
    %s21 = ssub.s32 %s15, 2
    %s22 = sadd.s32 %s15, 1
    %s23 = sld [smem:[#allocation3 + %s15]]
    %s24 = ssub.s32 %s23, 1
    %p25 = scmp.lt.s32.totalorder %s24, 0
    %s26 = ssub.s32 0, %s24
    %s27 = scalar_select %p25, %s26, %s24
    %s28 = sand.u32 %s27, 7
    %s29 = ssub.s32 0, %s28
    %s30 = scalar_select %p25, %s29, %s28
    %p31 = scmp.ne.s32.totalorder %s30, 0
    %p32 = scmp.lt.s32.totalorder %s30, 0
    %p33 = pnand %p32, %p31
    %p34 = pneg %p33
    %s35 = sadd.s32 %s30, 8
    %s36 = scalar_select %p34, %s35, %s30
    %s37 = sld [smem:[#allocation3 + %s22]]
    %s38 = ssub.s32 %s37, 1
    %p39 = scmp.lt.s32.totalorder %s38, 0
    %s40 = ssub.s32 0, %s38
    %s41 = scalar_select %p39, %s40, %s38
    %s42 = sand.u32 %s41, 7
    %s43 = ssub.s32 0, %s42
    %s44 = scalar_select %p39, %s43, %s42
    %p45 = scmp.ne.s32.totalorder %s44, 0
    %p46 = scmp.lt.s32.totalorder %s44, 0
    %p47 = pnand %p46, %p45
    %p48 = pneg %p47
    %s49 = sadd.s32 %s44, 8
    %s50 = scalar_select %p48, %s49, %s44
    %s51 = ssub.s32 %s15, %s22
    %s52 = ssub.s32 %s36, %s50
    %s53 = sor.u32 %s51, %s52
    %p54 = scmp.eq.s32.totalorder %s53, 0
    %s56 = sadd.s32 %s55, 1
    %s57 = scalar_select %p54, %s55, %s56
    %p60 = pneg %p54
    %p61 = scmp.eq.s32.totalorder %s15, 1
    %p62 = por %p60, %p61
    %p63 = scmp.ne.s32.totalorder %s55, %s58
    %p64 = scmp.eq.s32.totalorder %s15, 0
    %p65 = por %p63, %p64
    %p66 = scmp.ne.s32.totalorder %s55, %s58
    %p67 = scmp.eq.s32.totalorder %s20, 1
    %p68 = por %p66, %p67
    %p69 = scmp.ne.s32.totalorder %s58, %s59
    %p70 = scmp.eq.s32.totalorder %s20, 0
    %p71 = por %p69, %p70
    %p72 = scmp.ne.s32.totalorder %s58, %s59
    %p73 = scmp.eq.s32.totalorder %s21, 1
    %p74 = por %p72, %p73
    %p76 = scmp.ne.s32.totalorder %s59, %s75
    %p77 = scmp.eq.s32.totalorder %s21, 0
    %p78 = por %p76, %p77
    %s79 = sld [smem:[#allocation3 + %s15]]
    %s80 = ssub.s32 %s79, 1
    %p81 = scmp.lt.s32.totalorder %s80, 0
    %s82 = ssub.s32 0, %s80
    %s83 = scalar_select %p81, %s82, %s80
    %s84 = sand.u32 %s83, 7
    %s85 = ssub.s32 0, %s84
    %s86 = scalar_select %p81, %s85, %s84
    %p87 = scmp.ne.s32.totalorder %s86, 0
    %p88 = scmp.lt.s32.totalorder %s86, 0
    %p89 = pnand %p88, %p87
    %p90 = pneg %p89
    %s91 = sadd.s32 %s86, 8
    %s92 = scalar_select %p90, %s91, %s86
    %s93 = sld [smem:[#allocation3 + %s22]]
    %s94 = ssub.s32 %s93, 1
    %p95 = scmp.lt.s32.totalorder %s94, 0
    %s96 = ssub.s32 0, %s94
    %s97 = scalar_select %p95, %s96, %s94
    %s98 = sand.u32 %s97, 7
    %s99 = ssub.s32 0, %s98
    %s100 = scalar_select %p95, %s99, %s98
    %p101 = scmp.ne.s32.totalorder %s100, 0
    %p102 = scmp.lt.s32.totalorder %s100, 0
    %p103 = pnand %p102, %p101
    %p104 = pneg %p103
    %s105 = sadd.s32 %s100, 8
    %s106 = scalar_select %p104, %s105, %s100
    %s107 = ssub.s32 %s15, %s22
    %s108 = ssub.s32 %s92, %s106
    %s109 = sor.u32 %s107, %s108
    %p110 = scmp.eq.s32.totalorder %s109, 0
    %s112 = sadd.s32 %s111, 1
    %s113 = scalar_select %p110, %s111, %s112
    %p116 = pneg %p110
    %p117 = scmp.eq.s32.totalorder %s15, 1
    %p118 = por %p116, %p117
    %p119 = scmp.ne.s32.totalorder %s111, %s114
    %p120 = scmp.eq.s32.totalorder %s15, 0
    %p121 = por %p119, %p120
    %p122 = scmp.ne.s32.totalorder %s111, %s114
    %p123 = scmp.eq.s32.totalorder %s20, 1
    %p124 = por %p122, %p123
    %p125 = scmp.ne.s32.totalorder %s114, %s115
    %p126 = scmp.eq.s32.totalorder %s20, 0
    %p127 = por %p125, %p126
    %p128 = scmp.ne.s32.totalorder %s114, %s115
    %p129 = scmp.eq.s32.totalorder %s21, 1
    %p130 = por %p128, %p129
    %p132 = scmp.ne.s32.totalorder %s115, %s131
    %p133 = scmp.eq.s32.totalorder %s21, 0
    %p134 = por %p132, %p133
    %s135 = ssub.s32 %s15, %s22
    %p136 = scmp.eq.s32.totalorder %s135, 0
    %s138 = sadd.s32 %s137, 1
    %s139 = scalar_select %p136, %s137, %s138
    %p142 = pneg %p136
    %p143 = scmp.eq.s32.totalorder %s15, 1
    %p144 = por %p142, %p143
    %p145 = scmp.ne.s32.totalorder %s137, %s140
    %p146 = scmp.eq.s32.totalorder %s15, 0
    %p147 = por %p145, %p146
    %p148 = scmp.ne.s32.totalorder %s137, %s140
    %p149 = scmp.eq.s32.totalorder %s20, 1
    %p150 = por %p148, %p149
    %p151 = scmp.ne.s32.totalorder %s140, %s141
    %p152 = scmp.eq.s32.totalorder %s20, 0
    %p153 = por %p151, %p152
    %p154 = scmp.ne.s32.totalorder %s140, %s141
    %p155 = scmp.eq.s32.totalorder %s21, 1
    %p156 = por %p154, %p155
    %p158 = scmp.ne.s32.totalorder %s141, %s157
    %p159 = scmp.eq.s32.totalorder %s21, 0
    %p160 = por %p158, %p159
    %p161 = scmp.le.s32.totalorder 1, %s15
    %p162 = scmp.lt.s32.totalorder %s15, 3
    %p163 = pnand %p161, %p162
    %p164 = pneg %p163
    // Predicated region
    $region9: #{custom_bce.1} parent=5 // pred_check
      _
    $region10: #{custom_bce.1} parent=5 // pred_check_branch
      %166 = sbr.rel (%p163) target = $region12
    $region11: #{custom_bce.1} parent=5 // pred_region
      %s167 = ssub.s32 %s15, 1
    $region12: #{custom_bce.1} parent=5 // pred_fallthru
      _
    %p168 = scmp.lt.s32.totalorder %s15, 2
    // Predicated region
    $region13: #{custom_bce.1} parent=5 // pred_check
      %p169 = pneg %p168
    $region14: #{custom_bce.1} parent=5 // pred_check_branch
      %171 = sbr.rel (%p169) target = $region16
    $region15: #{custom_bce.1} parent=5 // pred_region
      // Predicated region
      $region17: #{custom_bce.1} parent=15 // pred_check
        %p172 = pneg %p65
      $region18: #{custom_bce.1} parent=15 // pred_check_branch
        %174 = sbr.rel (%p172) target = $region20
      $region19: #{custom_bce.1} parent=15 // pred_region
        %s175 = sld [smem:[#allocation3 + %s15]]
        %s176 = ssub.s32 %s175, 1
        %p177 = scmp.lt.s32.totalorder %s176, 0
        %s178 = ssub.s32 0, %s176
        %s179 = scalar_select %p177, %s178, %s176
        %s180 = sand.u32 %s179, 7
        %s181 = ssub.s32 0, %s180
        %s182 = scalar_select %p177, %s181, %s180
        %p183 = scmp.ne.s32.totalorder %s182, 0
        %p184 = scmp.lt.s32.totalorder %s182, 0
        %p185 = pnand %p184, %p183
        %p186 = pneg %p185
        %s187 = sadd.s32 %s182, 8
        %s188 = scalar_select %p186, %s187, %s182
        %p189 = scmp.lt.s32.totalorder %s15, 1
        %s190 = scalar_select %p189, %s15, 1
        %p191 = scmp.lt.s32.totalorder %s188, 7
        %s192 = scalar_select %p191, %s188, 7
        %s193 = smul.addr %s190, 8
        %s194 = sadd.s32 %s192, %s193
        %s195 = scalar_lea.vmem %s1, %s194
        %s196 = sld [smem:[#allocation3 + %s15]]
        %s197 = ssub.s32 %s196, 1
        %p198 = scmp.lt.s32.totalorder %s197, 0
        %s199 = ssub.s32 0, %s197
        %s200 = scalar_select %p198, %s199, %s197
        %s201 = sand.u32 %s200, 7
        %s202 = ssub.s32 0, %s201
        %s203 = scalar_select %p198, %s202, %s201
        %p204 = scmp.ne.s32.totalorder %s203, 0
        %p205 = scmp.lt.s32.totalorder %s203, 0
        %p206 = pnand %p205, %p204
        %p207 = pneg %p206
        %s208 = sadd.s32 %s203, 8
        %s209 = scalar_select %p207, %s208, %s203
      $region20: #{custom_bce.1} parent=15 // pred_fallthru
        _
      // Predicated region
      $region21: #{custom_bce.1} parent=15 // pred_check
        %p210 = pneg %p121
      $region22: #{custom_bce.1} parent=15 // pred_check_branch
        %212 = sbr.rel (%p210) target = $region24
      $region23: #{custom_bce.1} parent=15 // pred_region
        %s213 = sld [smem:[#allocation3 + %s15]]
        %s214 = ssub.s32 %s213, 1
        %p215 = scmp.lt.s32.totalorder %s214, 0
        %s216 = ssub.s32 0, %s214
        %s217 = scalar_select %p215, %s216, %s214
        %s218 = sand.u32 %s217, 7
        %s219 = ssub.s32 0, %s218
        %s220 = scalar_select %p215, %s219, %s218
        %p221 = scmp.ne.s32.totalorder %s220, 0
        %p222 = scmp.lt.s32.totalorder %s220, 0
        %p223 = pnand %p222, %p221
        %p224 = pneg %p223
        %s225 = sadd.s32 %s220, 8
        %s226 = scalar_select %p224, %s225, %s220
        %p227 = scmp.lt.s32.totalorder %s15, 1
        %s228 = scalar_select %p227, %s15, 1
        %p229 = scmp.lt.s32.totalorder %s226, 7
        %s230 = scalar_select %p229, %s226, 7
        %s231 = smul.addr %s228, 8
        %s232 = sadd.s32 %s230, %s231
        %s233 = scalar_lea.vmem %s2, %s232
        %s234 = sld [smem:[#allocation3 + %s15]]
        %s235 = ssub.s32 %s234, 1
        %p236 = scmp.lt.s32.totalorder %s235, 0
        %s237 = ssub.s32 0, %s235
        %s238 = scalar_select %p236, %s237, %s235
        %s239 = sand.u32 %s238, 7
        %s240 = ssub.s32 0, %s239
        %s241 = scalar_select %p236, %s240, %s239
        %p242 = scmp.ne.s32.totalorder %s241, 0
        %p243 = scmp.lt.s32.totalorder %s241, 0
        %p244 = pnand %p243, %p242
        %p245 = pneg %p244
        %s246 = sadd.s32 %s241, 8
        %s247 = scalar_select %p245, %s246, %s241
      $region24: #{custom_bce.1} parent=15 // pred_fallthru
        _
    $region16: #{custom_bce.1} parent=5 // pred_fallthru
      _
    %p248 = scmp.le.s32.totalorder 1, %s15
    %p249 = scmp.lt.s32.totalorder %s15, 3
    %p250 = pnand %p248, %p249
    %p251 = pneg %p250
    // Predicated region
    $region25: #{custom_bce.1} parent=5 // pred_check
      _
    $region26: #{custom_bce.1} parent=5 // pred_check_branch
      %253 = sbr.rel (%p250) target = $region28
    $region27: #{custom_bce.1} parent=5 // pred_region
      %s254 = ssub.s32 %s15, 1
      %s255 = sld [smem:[#allocation3 + %s20]]
      %s256 = ssub.s32 %s255, 1
      %p257 = scmp.lt.s32.totalorder %s256, 0
      %s258 = ssub.s32 0, %s256
      %s259 = scalar_select %p257, %s258, %s256
      %s260 = sand.u32 %s259, 7
      %s261 = ssub.s32 0, %s260
      %s262 = scalar_select %p257, %s261, %s260
      %p263 = scmp.ne.s32.totalorder %s262, 0
      %p264 = scmp.lt.s32.totalorder %s262, 0
      %p265 = pnand %p264, %p263
      %p266 = pneg %p265
      %s267 = sadd.s32 %s262, 8
      %s268 = scalar_select %p266, %s267, %s262
      %p269 = scmp.lt.s32.totalorder %s20, 1
      %s270 = scalar_select %p269, %s20, 1
      %p271 = scmp.lt.s32.totalorder %s268, 7
      %s272 = scalar_select %p271, %s268, 7
      %s273 = smul.addr %s270, 8
      %s274 = sadd.s32 %s272, %s273
      %s275 = scalar_lea.vmem %s1, %s274
      %p276 = pneg %p71
      %p277 = pneg %p68
      %s278 = sld [smem:[#allocation3 + %s20]]
      %s279 = ssub.s32 %s278, 1
      %p280 = scmp.lt.s32.totalorder %s279, 0
      %s281 = ssub.s32 0, %s279
      %s282 = scalar_select %p280, %s281, %s279
      %s283 = sand.u32 %s282, 7
      %s284 = ssub.s32 0, %s283
      %s285 = scalar_select %p280, %s284, %s283
      %p286 = scmp.ne.s32.totalorder %s285, 0
      %p287 = scmp.lt.s32.totalorder %s285, 0
      %p288 = pnand %p287, %p286
      %p289 = pneg %p288
      %s290 = sadd.s32 %s285, 8
      %s291 = scalar_select %p289, %s290, %s285
      %p292 = scmp.lt.s32.totalorder %s20, 1
      %s293 = scalar_select %p292, %s20, 1
      %p294 = scmp.lt.s32.totalorder %s291, 7
      %s295 = scalar_select %p294, %s291, 7
      %s296 = smul.addr %s293, 8
      %s297 = sadd.s32 %s295, %s296
      %s298 = scalar_lea.vmem %s2, %s297
      %p299 = pneg %p127
      %p300 = pneg %p124
      %p301 = pneg %p153
      %p302 = pneg %p150
      %p303 = scmp.lt.s32.totalorder %s20, 1
      %s304 = scalar_select %p303, %s20, 1
      %s305 = scalar_lea.vmem %s3, %s304
      %s306 = sld [smem:[#allocation3 + %s20]]
      %s307 = ssub.s32 %s306, 1
      %p308 = scmp.lt.s32.totalorder %s307, 0
      %s309 = ssub.s32 0, %s307
      %s310 = scalar_select %p308, %s309, %s307
      %s311 = sand.u32 %s310, 7
      %s312 = ssub.s32 0, %s311
      %s313 = scalar_select %p308, %s312, %s311
      %p314 = scmp.ne.s32.totalorder %s313, 0
      %p315 = scmp.lt.s32.totalorder %s313, 0
      %p316 = pnand %p315, %p314
      %p317 = pneg %p316
      %s318 = sadd.s32 %s313, 8
      %s319 = scalar_select %p317, %s318, %s313
      %p320 = scmp.lt.s32.totalorder %s20, 1
      %s321 = scalar_select %p320, %s20, 1
      %p322 = scmp.lt.s32.totalorder %s319, 7
      %s323 = scalar_select %p322, %s319, 7
      %s324 = smul.addr %s321, 8
      %s325 = sadd.s32 %s323, %s324
      %s326 = scalar_lea.vmem %s1, %s325
      %s327 = sld [smem:[#allocation3 + %s20]]
      %s328 = ssub.s32 %s327, 1
      %p329 = scmp.lt.s32.totalorder %s328, 0
      %s330 = ssub.s32 0, %s328
      %s331 = scalar_select %p329, %s330, %s328
      %s332 = sand.u32 %s331, 7
      %s333 = ssub.s32 0, %s332
      %s334 = scalar_select %p329, %s333, %s332
      %p335 = scmp.ne.s32.totalorder %s334, 0
      %p336 = scmp.lt.s32.totalorder %s334, 0
      %p337 = pnand %p336, %p335
      %p338 = pneg %p337
      %s339 = sadd.s32 %s334, 8
      %s340 = scalar_select %p338, %s339, %s334
      %s341 = sld [smem:[#allocation3 + %s20]]
      %s342 = ssub.s32 %s341, 1
      %p343 = scmp.lt.s32.totalorder %s342, 0
      %s344 = ssub.s32 0, %s342
      %s345 = scalar_select %p343, %s344, %s342
      %s346 = sand.u32 %s345, 7
      %s347 = ssub.s32 0, %s346
      %s348 = scalar_select %p343, %s347, %s346
      %p349 = scmp.ne.s32.totalorder %s348, 0
      %p350 = scmp.lt.s32.totalorder %s348, 0
      %p351 = pnand %p350, %p349
      %p352 = pneg %p351
      %s353 = sadd.s32 %s348, 8
      %s354 = scalar_select %p352, %s353, %s348
      %p355 = scmp.lt.s32.totalorder %s20, 1
      %s356 = scalar_select %p355, %s20, 1
      %p357 = scmp.lt.s32.totalorder %s354, 7
      %s358 = scalar_select %p357, %s354, 7
      %s359 = smul.addr %s356, 8
      %s360 = sadd.s32 %s358, %s359
      %s361 = scalar_lea.vmem %s2, %s360
      %s362 = sld [smem:[#allocation3 + %s20]]
      %s363 = ssub.s32 %s362, 1
      %p364 = scmp.lt.s32.totalorder %s363, 0
      %s365 = ssub.s32 0, %s363
      %s366 = scalar_select %p364, %s365, %s363
      %s367 = sand.u32 %s366, 7
      %s368 = ssub.s32 0, %s367
      %s369 = scalar_select %p364, %s368, %s367
      %p370 = scmp.ne.s32.totalorder %s369, 0
      %p371 = scmp.lt.s32.totalorder %s369, 0
      %p372 = pnand %p371, %p370
      %p373 = pneg %p372
      %s374 = sadd.s32 %s369, 8
      %s375 = scalar_select %p373, %s374, %s369
      %p376 = scmp.lt.s32.totalorder %s20, 1
      %s377 = scalar_select %p376, %s20, 1
      %s378 = scalar_lea.vmem %s3, %s377
      %v379 = vld [vmem:[%s326] sm:$0x1]
      %v380 = vld [vmem:[%s361] sm:$0x1]
      %vm381 = vcmp.ne.f32.partialorder %v380, 0.0
      %v382 = vsub.f32 1.0, %v379
      %v383 = vsel %vm381, %v379, %v382
      %v384 = vmax.f32 %v383, 1e-30
      %v385 = vlog2.pop %v384
      %v386 = vmul.f32 %v385, 0.6931472
      %vm387 = vcmask 24576
      %v388 = vsel %vm387, %v386, 0.0
      %389 = vadd.xlane.f32.xlu0 %v388
      %v390 = vpop.xlane.xlu0 %389
      %vm391 = vcmask 0
      %392 = vst.msk [vmem:[%s378] sm:$0x1] %vm391, %v390
      %p393 = scmp.lt.s32.totalorder %s20, 1
      %s394 = scalar_select %p393, %s20, 1
      %s395 = scalar_lea.vmem %s3, %s394
      // Predicated region
      $region29: #{custom_bce.1} parent=27 // pred_check
        %p396 = pneg %p150
      $region30: #{custom_bce.1} parent=27 // pred_check_branch
        %398 = sbr.rel (%p396) target = $region32
      $region31: #{custom_bce.1} parent=27 // pred_region
        _
      $region32: #{custom_bce.1} parent=27 // pred_fallthru
        _
    $region28: #{custom_bce.1} parent=5 // pred_fallthru
      _
    %p399 = scmp.le.s32.totalorder 2, %s15
    // Predicated region
    $region33: #{custom_bce.1} parent=5 // pred_check
      %p400 = pneg %p399
    $region34: #{custom_bce.1} parent=5 // pred_check_branch
      %402 = sbr.rel (%p400) target = $region36
    $region35: #{custom_bce.1} parent=5 // pred_region
      %s403 = ssub.s32 %s15, 2
      // Predicated region
      $region37: #{custom_bce.1} parent=35 // pred_check
        %p404 = pneg %p156
      $region38: #{custom_bce.1} parent=35 // pred_check_branch
        %406 = sbr.rel (%p404) target = $region40
      $region39: #{custom_bce.1} parent=35 // pred_region
        %p407 = scmp.lt.s32.totalorder %s21, 1
        %s408 = scalar_select %p407, %s21, 1
        %s409 = scalar_lea.vmem %s3, %s408
      $region40: #{custom_bce.1} parent=35 // pred_fallthru
        _
    $region36: #{custom_bce.1} parent=5 // pred_fallthru
      _
  $region6: #{custom_bce.1} parent=0 // loop_footer
    %s19 = sadd.s32 1, %s15
  $region7: #{custom_bce.1} parent=0 // loop_footer_branch
    %14 = sbr.rel target = $region3
  $region8: #{custom_bce.1} parent=0 // loop_exit
    _

</llo_original>
